<compile_context>
chip_gen: v5e
topology: v5e:2x2
jax: 0.10.0
libtpu: 0.0.40
codegen_flags: <defaults>
</compile_context>

<pallas_src>
import math
import functools

import jax
import jax.numpy as jnp
from jax import lax
from jax.experimental import pallas as pl
from jax.experimental.pallas import tpu as pltpu


def mha_kernel(q_ref, k_ref, v_ref,
               wq_ref, wk_ref, wv_ref,
               wp_ref, bp_ref,
               out_ref,
               kproj_ref, vproj_ref, heads_ref,
               *, num_heads, d_k):
    """One grid step == (one batch element, one query tile).

    Grid = (B, n_q_tiles); axis 1 is "arbitrary" so kproj/vproj scratch written
    at t == 0 is reused by every later query tile of the same batch element.
    """
    f32 = jnp.float32
    bf16 = jnp.bfloat16

    # --- K/V projections: once per batch element (t == 0 only) -------------
    @pl.when(pl.program_id(1) == 0)
    def _():
        kproj_ref[...] = jnp.dot(k_ref[0], wk_ref[...],
                                 preferred_element_type=f32).astype(bf16)
        vproj_ref[...] = jnp.dot(v_ref[0], wv_ref[...],
                                 preferred_element_type=f32).astype(bf16)

    # --- Q projection for this query tile (fold in 1/sqrt(d_k)) ------------
    inv_sqrt_dk = 1.0 / math.sqrt(d_k)
    q_all = (jnp.dot(q_ref[0], wq_ref[...], preferred_element_type=f32)
             * inv_sqrt_dk).astype(bf16)                       # (tq, D)

    contract_last = (((1,), (1,)), ((), ()))   # contract dim 1 of both operands

    def attend(q_h, k_h, v_h):
        # scores without materializing k.T (dot_general contraction).
        s = lax.dot_general(q_h, k_h, contract_last,
                            preferred_element_type=f32)        # (tq, Sk)
        # numerically-stable softmax; exp stays f32 (EUP slot is the bound on
        # v6e/v7x, but f32 keeps v5e support + accuracy); reciprocal on EUP.
        m = jnp.max(s, axis=-1, keepdims=True)
        e = jnp.exp(s - m)
        denom = jnp.sum(e, axis=-1, keepdims=True)
        att = (e * pl.reciprocal(denom, approx=True)).astype(bf16)
        return jnp.dot(att, v_h, preferred_element_type=f32).astype(bf16)

    if d_k % 128 == 0 and num_heads >= 8:
        # Dynamic, 128-aligned lane slices inside a fori_loop bound the live
        # range of one head's (tq, Sk) f32 temporaries.
        def body(h, carry):
            off = pl.multiple_of(h * d_k, 128)
            q_h = lax.dynamic_slice_in_dim(q_all, off, d_k, axis=1)
            k_h = kproj_ref[:, pl.ds(off, d_k)]
            v_h = vproj_ref[:, pl.ds(off, d_k)]
            heads_ref[:, pl.ds(off, d_k)] = attend(q_h, k_h, v_h)
            return carry
        lax.fori_loop(0, num_heads, body, 0, unroll=False)
    else:
        # Few heads / narrow d_k: static unroll with static slices.
        for h in range(num_heads):
            sl = slice(h * d_k, (h + 1) * d_k)
            heads_ref[:, sl] = attend(q_all[:, sl],
                                      kproj_ref[:, sl],
                                      vproj_ref[:, sl])

    # --- Single full-width output projection + bias -------------------------
    out = jnp.dot(heads_ref[...], wp_ref[...], preferred_element_type=f32)
    out_ref[0] = (out + bp_ref[...]).astype(out_ref.dtype)


def _pick_vmem_limit(tq, Sk, D):
    """Size the scoped VMEM limit from the real footprint and device capacity."""
    bf, f32 = 2, 4
    blocks = (2 * tq * D * bf            # q block (double-buffered)
              + 2 * 2 * Sk * D * bf      # k, v blocks (double-buffered)
              + 4 * D * D * bf           # weights (single-buffered)
              + D * f32                  # bias
              + 2 * tq * D * bf)         # out block (double-buffered, bf16)
    scratch = 2 * Sk * D * bf + tq * D * bf
    temps = 2 * tq * Sk * f32 + 3 * max(Sk, tq) * D * f32   # score/exp + f32 proj temps
    need = blocks + scratch + temps + (2 << 20)
    try:
        cap = int(pltpu.get_tpu_info().vmem_capacity_bytes)
    except Exception:
        cap = 64 * 1024 * 1024           # conservative fallback (v7x-sized)
    return int(min(max(need, 32 * 1024 * 1024), int(cap * 0.85)))


def multi_head_attention(query, key, value, params, num_heads):
    """query/key/value: (B, S, d_model) float32. Returns (B, Sq, d_model) f32."""
    B, Sq, D = query.shape
    Sk = key.shape[1]
    d_k = D // num_heads

    compute_dtype = jnp.bfloat16

    # Query-tile size: large tiles amortize per-step overhead; key axis stays
    # resident (projected once into scratch).
    # TODO(synk): for very long Sk (v7x 64 MiB VMEM), add a third "arbitrary"
    # K/V-tile grid axis with an online-softmax (flash) m/l/acc carry so K/V
    # and the score tile are O(tq*tk) instead of O(Sk).
    max_tq = 256
    if Sq <= max_tq:
        tq = Sq
        Sq_pad = Sq
        q_in = query
    else:
        tq = max_tq
        n_tiles = pl.cdiv(Sq, tq)
        Sq_pad = n_tiles * tq
        q_in = (jnp.pad(query, ((0, 0), (0, Sq_pad - Sq), (0, 0)))
                if Sq_pad != Sq else query)
    n_q_tiles = Sq_pad // tq

    q = q_in.astype(compute_dtype)
    k = key.astype(compute_dtype)
    v = value.astype(compute_dtype)
    wq = params["wq"].astype(compute_dtype)        # (D, D): per-head W_q^T packed column-wise
    wk = params["wk"].astype(compute_dtype)
    wv = params["wv"].astype(compute_dtype)
    wp = params["wp_t"].astype(compute_dtype)      # (D, D): W_proj^T
    bp = params["bp"].reshape(1, D).astype(jnp.float32)

    grid = (B, n_q_tiles)
    kernel = functools.partial(mha_kernel, num_heads=num_heads, d_k=d_k)

    # Grid-invariant weights: single-buffered (constant index_map -> no re-DMA).
    w_spec = pl.BlockSpec((D, D), lambda b, t: (0, 0), pipeline_mode=pl.Buffered(1))
    b_spec = pl.BlockSpec((1, D), lambda b, t: (0, 0), pipeline_mode=pl.Buffered(1))
    q_spec = pl.BlockSpec((1, tq, D), lambda b, t: (b, t, 0))
    kv_spec = pl.BlockSpec((1, Sk, D), lambda b, t: (b, 0, 0))
    out_spec = pl.BlockSpec((1, tq, D), lambda b, t: (b, t, 0))

    bf, f32b = 2, 4
    cost = pl.CostEstimate(
        flops=B * (4 * Sq_pad * D * D          # q + output projections
                   + 4 * Sk * D * D            # k + v projections (once per batch)
                   + 4 * Sq_pad * Sk * D),     # scores + att @ v over all heads
        transcendentals=B * num_heads * Sq_pad * Sk,
        bytes_accessed=(B * Sq_pad * D * bf            # q in
                        + 2 * B * Sk * D * bf          # k, v in (read once per batch)
                        + 4 * D * D * bf + D * f32b    # weights + bias
                        + B * Sq_pad * D * bf),        # out (bf16)
    )

    out = pl.pallas_call(
        kernel,
        out_shape=jax.ShapeDtypeStruct((B, Sq_pad, D), jnp.bfloat16),
        grid_spec=pltpu.PrefetchScalarGridSpec(
            num_scalar_prefetch=0,
            grid=grid,
            in_specs=[
                q_spec, kv_spec, kv_spec,       # query, key, value
                w_spec,                         # wq (fused per-head, packed column-wise)
                w_spec,                         # wk
                w_spec,                         # wv
                w_spec,                         # wp_t
                b_spec,                         # bias
            ],
            out_specs=out_spec,
            scratch_shapes=[
                pltpu.VMEM((Sk, D), compute_dtype),   # projected K (per batch elem)
                pltpu.VMEM((Sk, D), compute_dtype),   # projected V (per batch elem)
                pltpu.VMEM((tq, D), compute_dtype),   # per-head outputs, lane-packed
            ],
        ),
        compiler_params=pltpu.CompilerParams(
            # batch axis parallel (v7x megacore splits batches); query-tile axis
            # must be arbitrary because kproj/vproj scratch carries across it.
            dimension_semantics=("parallel", "arbitrary"),
            vmem_limit_bytes=_pick_vmem_limit(tq, Sk, D),
        ),
        cost_estimate=cost,
    )(q, k, v, wq, wk, wv, wp, bp)

    if Sq_pad != Sq:
        out = out[:, :Sq, :]
    # Cast back to f32 only for interface parity with the PyTorch module;
    # bf16 consumers can use the kernel output directly.
    return out.astype(jnp.float32)


def init_params(key, d_model, num_heads):
    """Deterministic synthetic init (PyTorch-Linear-style uniform bounds).

    Per-head q/k/v weights are stored packed column-wise in a single (D, D)
    matrix: columns h*d_k:(h+1)*d_k belong to head h (already transposed for
    right-multiplication).
    """
    ks = jax.random.split(key, 5)
    bound_in = 1.0 / math.sqrt(d_model)
    wq = jax.random.uniform(ks[0], (d_model, d_model), jnp.float32, -bound_in, bound_in)
    wk = jax.random.uniform(ks[1], (d_model, d_model), jnp.float32, -bound_in, bound_in)
    wv = jax.random.uniform(ks[2], (d_model, d_model), jnp.float32, -bound_in, bound_in)
    wp_t = jax.random.uniform(ks[3], (d_model, d_model), jnp.float32, -bound_in, bound_in)
    bp = jax.random.uniform(ks[4], (d_model,), jnp.float32, -bound_in, bound_in)
    return {"wq": wq, "wk": wk, "wv": wv, "wp_t": wp_t, "bp": bp}


def reference_mha(query, key, value, params, num_heads):
    """Pure-JAX f32 reference matching the PyTorch forward exactly."""
    D = query.shape[-1]
    d_k = D // num_heads
    outs = []
    for h in range(num_heads):
        sl = slice(h * d_k, (h + 1) * d_k)
        q = query @ params["wq"][:, sl]
        k = key @ params["wk"][:, sl]
        v = value @ params["wv"][:, sl]
        s = jnp.einsum("bqd,bkd->bqk", q, k) / math.sqrt(d_k)
        a = jax.nn.softmax(s, axis=-1)
        outs.append(jnp.einsum("bqk,bkd->bqd", a, v))
    cat = jnp.concatenate(outs, axis=-1)
    return cat @ params["wp_t"] + params["bp"]


if __name__ == "__main__":
    B, S, d_model, num_heads = 2, 8, 32, 4

    key = jax.random.PRNGKey(0)
    kq, kk, kv, kp = jax.random.split(key, 4)
    query = jax.random.normal(kq, (B, S, d_model), jnp.float32)
    key_in = jax.random.normal(kk, (B, S, d_model), jnp.float32)
    value = jax.random.normal(kv, (B, S, d_model), jnp.float32)

    params = init_params(kp, d_model, num_heads)

    out = multi_head_attention(query, key_in, value, params, num_heads)
    out = jax.block_until_ready(out)

    ref = reference_mha(query, key_in, value, params, num_heads)
    assert out.shape == (B, S, d_model)
    # bf16 MXU operands, bf16 output + approx reciprocal => looser tolerance.
    assert jnp.allclose(out, ref, atol=5e-2, rtol=5e-2), "mismatch vs reference"

    print("KERNEL_OK")
</pallas_src>

<mosaic_0001>
module attributes {stable_mosaic.version = 11 : i64} {
  func.func @mha_kernel(%arg0: i32, %arg1: i32, %arg2: memref<1x8x32xbf16, #tpu.memory_space<vmem>>, %arg3: memref<1x8x32xbf16, #tpu.memory_space<vmem>>, %arg4: memref<1x8x32xbf16, #tpu.memory_space<vmem>>, %arg5: memref<32x32xbf16, #tpu.memory_space<vmem>>, %arg6: memref<32x32xbf16, #tpu.memory_space<vmem>>, %arg7: memref<32x32xbf16, #tpu.memory_space<vmem>>, %arg8: memref<32x32xbf16, #tpu.memory_space<vmem>>, %arg9: memref<1x32xf32, #tpu.memory_space<vmem>>, %arg10: memref<1x8x32xbf16, #tpu.memory_space<vmem>>, %arg11: memref<8x32xbf16, #tpu.memory_space<vmem>>, %arg12: memref<8x32xbf16, #tpu.memory_space<vmem>>, %arg13: memref<8x32xbf16, #tpu.memory_space<vmem>>) attributes {dimension_semantics = [#tpu.dimension_semantics<parallel>, #tpu.dimension_semantics<arbitrary>], iteration_bounds = array<i64: 2, 1>, scalar_prefetch = 0 : i64, scratch_operands = 3 : i64, tpu.core_type = #tpu.core_type<tc>, window_params = [{transform_indices = @transform_0, window_bounds = array<i64: 1, 8, 32>}, {transform_indices = @transform_1, window_bounds = array<i64: 1, 8, 32>}, {transform_indices = @transform_2, window_bounds = array<i64: 1, 8, 32>}, {pipeline_mode = #tpu.pipeline_mode<synchronous>, transform_indices = @transform_3, window_bounds = array<i64: 32, 32>}, {pipeline_mode = #tpu.pipeline_mode<synchronous>, transform_indices = @transform_4, window_bounds = array<i64: 32, 32>}, {pipeline_mode = #tpu.pipeline_mode<synchronous>, transform_indices = @transform_5, window_bounds = array<i64: 32, 32>}, {pipeline_mode = #tpu.pipeline_mode<synchronous>, transform_indices = @transform_6, window_bounds = array<i64: 32, 32>}, {pipeline_mode = #tpu.pipeline_mode<synchronous>, transform_indices = @transform_7, window_bounds = array<i64: 1, 32>}, {transform_indices = @transform_8, window_bounds = array<i64: 1, 8, 32>}]} {
    %c0_i32 = arith.constant 0 : i32
    %0 = arith.cmpi eq, %arg1, %c0_i32 : i32
    %1 = arith.extui %0 : i1 to i32
    %c0_i32_0 = arith.constant 0 : i32
    %2 = arith.cmpi ne, %1, %c0_i32_0 : i32
    scf.if %2 {
      %c0_53 = arith.constant 0 : index
      %c0_54 = arith.constant 0 : index
      %c0_55 = arith.constant 0 : index
      %92 = vector.load %arg3[%c0_53, %c0_54, %c0_55] : memref<1x8x32xbf16, #tpu.memory_space<vmem>>, vector<1x8x32xbf16>
      %93 = vector.shape_cast %92 : vector<1x8x32xbf16> to vector<8x32xbf16>
      %c0_56 = arith.constant 0 : index
      %c0_57 = arith.constant 0 : index
      %94 = vector.load %arg6[%c0_56, %c0_57] : memref<32x32xbf16, #tpu.memory_space<vmem>>, vector<32x32xbf16>
      %cst_58 = arith.constant dense<0.000000e+00> : vector<8x32xf32>
      %95 = tpu.matmul %93, %94, %cst_58 {dimension_numbers = #tpu.dot_dimension_numbers<[1], [0], [0], [1], [0, 0, 1, 1], [], []>} : vector<8x32xbf16>, vector<32x32xbf16>, vector<8x32xf32> -> vector<8x32xf32>
      %96 = arith.truncf %95 : vector<8x32xf32> to vector<8x32xbf16>
      %c0_59 = arith.constant 0 : index
      %c0_60 = arith.constant 0 : index
      %97 = vector.load %arg11[%c0_59, %c0_60] : memref<8x32xbf16, #tpu.memory_space<vmem>>, vector<8x32xbf16>
      tpu.vector_store %arg11[%c0_59, %c0_60], %96 {strides = array<i32>} : memref<8x32xbf16, #tpu.memory_space<vmem>>, vector<8x32xbf16>,
      %c0_61 = arith.constant 0 : index
      %c0_62 = arith.constant 0 : index
      %c0_63 = arith.constant 0 : index
      %98 = vector.load %arg4[%c0_61, %c0_62, %c0_63] : memref<1x8x32xbf16, #tpu.memory_space<vmem>>, vector<1x8x32xbf16>
      %99 = vector.shape_cast %98 : vector<1x8x32xbf16> to vector<8x32xbf16>
      %c0_64 = arith.constant 0 : index
      %c0_65 = arith.constant 0 : index
      %100 = vector.load %arg7[%c0_64, %c0_65] : memref<32x32xbf16, #tpu.memory_space<vmem>>, vector<32x32xbf16>
      %cst_66 = arith.constant dense<0.000000e+00> : vector<8x32xf32>
      %101 = tpu.matmul %99, %100, %cst_66 {dimension_numbers = #tpu.dot_dimension_numbers<[1], [0], [0], [1], [0, 0, 1, 1], [], []>} : vector<8x32xbf16>, vector<32x32xbf16>, vector<8x32xf32> -> vector<8x32xf32>
      %102 = arith.truncf %101 : vector<8x32xf32> to vector<8x32xbf16>
      %c0_67 = arith.constant 0 : index
      %c0_68 = arith.constant 0 : index
      %103 = vector.load %arg12[%c0_67, %c0_68] : memref<8x32xbf16, #tpu.memory_space<vmem>>, vector<8x32xbf16>
      tpu.vector_store %arg12[%c0_67, %c0_68], %102 {strides = array<i32>} : memref<8x32xbf16, #tpu.memory_space<vmem>>, vector<8x32xbf16>,
    } else {
    }
    %c0 = arith.constant 0 : index
    %c0_1 = arith.constant 0 : index
    %c0_2 = arith.constant 0 : index
    %3 = vector.load %arg2[%c0, %c0_1, %c0_2] : memref<1x8x32xbf16, #tpu.memory_space<vmem>>, vector<1x8x32xbf16>
    %4 = vector.shape_cast %3 : vector<1x8x32xbf16> to vector<8x32xbf16>
    %c0_3 = arith.constant 0 : index
    %c0_4 = arith.constant 0 : index
    %5 = vector.load %arg5[%c0_3, %c0_4] : memref<32x32xbf16, #tpu.memory_space<vmem>>, vector<32x32xbf16>
    %cst = arith.constant dense<0.000000e+00> : vector<8x32xf32>
    %6 = tpu.matmul %4, %5, %cst {dimension_numbers = #tpu.dot_dimension_numbers<[1], [0], [0], [1], [0, 0, 1, 1], [], []>} : vector<8x32xbf16>, vector<32x32xbf16>, vector<8x32xf32> -> vector<8x32xf32>
    %cst_5 = arith.constant 0.353553385 : f32
    %7 = vector.broadcast %cst_5 : f32 to vector<8x32xf32>
    %8 = arith.mulf %6, %7 : vector<8x32xf32>
    %9 = arith.truncf %8 : vector<8x32xf32> to vector<8x32xbf16>
    %10 = vector.extract_strided_slice %9 {offsets = [0, 0], sizes = [8, 8], strides = [1, 1]} : vector<8x32xbf16> to vector<8x8xbf16>
    %c0_6 = arith.constant 0 : index
    %c0_7 = arith.constant 0 : index
    %11 = vector.load %arg11[%c0_6, %c0_7] : memref<8x32xbf16, #tpu.memory_space<vmem>>, vector<8x8xbf16>
    %c0_8 = arith.constant 0 : index
    %c0_9 = arith.constant 0 : index
    %12 = vector.load %arg12[%c0_8, %c0_9] : memref<8x32xbf16, #tpu.memory_space<vmem>>, vector<8x8xbf16>
    %cst_10 = arith.constant dense<0.000000e+00> : vector<8x8xf32>
    %13 = tpu.matmul %10, %11, %cst_10 {dimension_numbers = #tpu.dot_dimension_numbers<[1], [1], [0], [0], [0, 0, 1, 0], [], []>} : vector<8x8xbf16>, vector<8x8xbf16>, vector<8x8xf32> -> vector<8x8xf32>
    %cst_11 = arith.constant dense<0xFF800000> : vector<8xf32>
    %14 = vector.multi_reduction <maximumf>, %13, %cst_11 [1] : vector<8x8xf32> to vector<8xf32>
    %15 = vector.shape_cast %14 : vector<8xf32> to vector<8x1xf32>
    %16 = vector.broadcast %15 : vector<8x1xf32> to vector<8x8xf32>
    %17 = arith.subf %13, %16 : vector<8x8xf32>
    %18 = math.exp %17 : vector<8x8xf32>
    %cst_12 = arith.constant dense<0.000000e+00> : vector<8xf32>
    %19 = vector.multi_reduction <add>, %18, %cst_12 [1] : vector<8x8xf32> to vector<8xf32>
    %20 = vector.shape_cast %19 : vector<8xf32> to vector<8x1xf32>
    %21 = tpu.reciprocal %20 {approx = true} : vector<8x1xf32> -> vector<8x1xf32>
    %22 = vector.broadcast %21 : vector<8x1xf32> to vector<8x8xf32>
    %23 = arith.mulf %18, %22 : vector<8x8xf32>
    %24 = arith.truncf %23 : vector<8x8xf32> to vector<8x8xbf16>
    %cst_13 = arith.constant dense<0.000000e+00> : vector<8x8xf32>
    %25 = tpu.matmul %24, %12, %cst_13 {dimension_numbers = #tpu.dot_dimension_numbers<[1], [0], [0], [1], [0, 0, 1, 1], [], []>} : vector<8x8xbf16>, vector<8x8xbf16>, vector<8x8xf32> -> vector<8x8xf32>
    %26 = arith.truncf %25 : vector<8x8xf32> to vector<8x8xbf16>
    %c0_14 = arith.constant 0 : index
    %c0_15 = arith.constant 0 : index
    %27 = vector.load %arg13[%c0_14, %c0_15] : memref<8x32xbf16, #tpu.memory_space<vmem>>, vector<8x8xbf16>
    tpu.vector_store %arg13[%c0_14, %c0_15], %26 {strides = array<i32>} : memref<8x32xbf16, #tpu.memory_space<vmem>>, vector<8x8xbf16>,
    %28 = vector.extract_strided_slice %9 {offsets = [0, 8], sizes = [8, 8], strides = [1, 1]} : vector<8x32xbf16> to vector<8x8xbf16>
    %c0_16 = arith.constant 0 : index
    %c8 = arith.constant 8 : index
    %29 = vector.load %arg11[%c0_16, %c8] : memref<8x32xbf16, #tpu.memory_space<vmem>>, vector<8x8xbf16>
    %c0_17 = arith.constant 0 : index
    %c8_18 = arith.constant 8 : index
    %30 = vector.load %arg12[%c0_17, %c8_18] : memref<8x32xbf16, #tpu.memory_space<vmem>>, vector<8x8xbf16>
    %cst_19 = arith.constant dense<0.000000e+00> : vector<8x8xf32>
    %31 = tpu.matmul %28, %29, %cst_19 {dimension_numbers = #tpu.dot_dimension_numbers<[1], [1], [0], [0], [0, 0, 1, 0], [], []>} : vector<8x8xbf16>, vector<8x8xbf16>, vector<8x8xf32> -> vector<8x8xf32>
    %cst_20 = arith.constant dense<0xFF800000> : vector<8xf32>
    %32 = vector.multi_reduction <maximumf>, %31, %cst_20 [1] : vector<8x8xf32> to vector<8xf32>
    %33 = vector.shape_cast %32 : vector<8xf32> to vector<8x1xf32>
    %34 = vector.broadcast %33 : vector<8x1xf32> to vector<8x8xf32>
    %35 = arith.subf %31, %34 : vector<8x8xf32>
    %36 = math.exp %35 : vector<8x8xf32>
    %cst_21 = arith.constant dense<0.000000e+00> : vector<8xf32>
    %37 = vector.multi_reduction <add>, %36, %cst_21 [1] : vector<8x8xf32> to vector<8xf32>
    %38 = vector.shape_cast %37 : vector<8xf32> to vector<8x1xf32>
    %39 = tpu.reciprocal %38 {approx = true} : vector<8x1xf32> -> vector<8x1xf32>
    %40 = vector.broadcast %39 : vector<8x1xf32> to vector<8x8xf32>
    %41 = arith.mulf %36, %40 : vector<8x8xf32>
    %42 = arith.truncf %41 : vector<8x8xf32> to vector<8x8xbf16>
    %cst_22 = arith.constant dense<0.000000e+00> : vector<8x8xf32>
    %43 = tpu.matmul %42, %30, %cst_22 {dimension_numbers = #tpu.dot_dimension_numbers<[1], [0], [0], [1], [0, 0, 1, 1], [], []>} : vector<8x8xbf16>, vector<8x8xbf16>, vector<8x8xf32> -> vector<8x8xf32>
    %44 = arith.truncf %43 : vector<8x8xf32> to vector<8x8xbf16>
    %c0_23 = arith.constant 0 : index
    %c8_24 = arith.constant 8 : index
    %45 = vector.load %arg13[%c0_23, %c8_24] : memref<8x32xbf16, #tpu.memory_space<vmem>>, vector<8x8xbf16>
    tpu.vector_store %arg13[%c0_23, %c8_24], %44 {strides = array<i32>} : memref<8x32xbf16, #tpu.memory_space<vmem>>, vector<8x8xbf16>,
    %46 = vector.extract_strided_slice %9 {offsets = [0, 16], sizes = [8, 8], strides = [1, 1]} : vector<8x32xbf16> to vector<8x8xbf16>
    %c0_25 = arith.constant 0 : index
    %c16 = arith.constant 16 : index
    %47 = vector.load %arg11[%c0_25, %c16] : memref<8x32xbf16, #tpu.memory_space<vmem>>, vector<8x8xbf16>
    %c0_26 = arith.constant 0 : index
    %c16_27 = arith.constant 16 : index
    %48 = vector.load %arg12[%c0_26, %c16_27] : memref<8x32xbf16, #tpu.memory_space<vmem>>, vector<8x8xbf16>
    %cst_28 = arith.constant dense<0.000000e+00> : vector<8x8xf32>
    %49 = tpu.matmul %46, %47, %cst_28 {dimension_numbers = #tpu.dot_dimension_numbers<[1], [1], [0], [0], [0, 0, 1, 0], [], []>} : vector<8x8xbf16>, vector<8x8xbf16>, vector<8x8xf32> -> vector<8x8xf32>
    %cst_29 = arith.constant dense<0xFF800000> : vector<8xf32>
    %50 = vector.multi_reduction <maximumf>, %49, %cst_29 [1] : vector<8x8xf32> to vector<8xf32>
    %51 = vector.shape_cast %50 : vector<8xf32> to vector<8x1xf32>
    %52 = vector.broadcast %51 : vector<8x1xf32> to vector<8x8xf32>
    %53 = arith.subf %49, %52 : vector<8x8xf32>
    %54 = math.exp %53 : vector<8x8xf32>
    %cst_30 = arith.constant dense<0.000000e+00> : vector<8xf32>
    %55 = vector.multi_reduction <add>, %54, %cst_30 [1] : vector<8x8xf32> to vector<8xf32>
    %56 = vector.shape_cast %55 : vector<8xf32> to vector<8x1xf32>
    %57 = tpu.reciprocal %56 {approx = true} : vector<8x1xf32> -> vector<8x1xf32>
    %58 = vector.broadcast %57 : vector<8x1xf32> to vector<8x8xf32>
    %59 = arith.mulf %54, %58 : vector<8x8xf32>
    %60 = arith.truncf %59 : vector<8x8xf32> to vector<8x8xbf16>
    %cst_31 = arith.constant dense<0.000000e+00> : vector<8x8xf32>
    %61 = tpu.matmul %60, %48, %cst_31 {dimension_numbers = #tpu.dot_dimension_numbers<[1], [0], [0], [1], [0, 0, 1, 1], [], []>} : vector<8x8xbf16>, vector<8x8xbf16>, vector<8x8xf32> -> vector<8x8xf32>
    %62 = arith.truncf %61 : vector<8x8xf32> to vector<8x8xbf16>
    %c0_32 = arith.constant 0 : index
    %c16_33 = arith.constant 16 : index
    %63 = vector.load %arg13[%c0_32, %c16_33] : memref<8x32xbf16, #tpu.memory_space<vmem>>, vector<8x8xbf16>
    tpu.vector_store %arg13[%c0_32, %c16_33], %62 {strides = array<i32>} : memref<8x32xbf16, #tpu.memory_space<vmem>>, vector<8x8xbf16>,
    %64 = vector.extract_strided_slice %9 {offsets = [0, 24], sizes = [8, 8], strides = [1, 1]} : vector<8x32xbf16> to vector<8x8xbf16>
    %c0_34 = arith.constant 0 : index
    %c24 = arith.constant 24 : index
    %65 = vector.load %arg11[%c0_34, %c24] : memref<8x32xbf16, #tpu.memory_space<vmem>>, vector<8x8xbf16>
    %c0_35 = arith.constant 0 : index
    %c24_36 = arith.constant 24 : index
    %66 = vector.load %arg12[%c0_35, %c24_36] : memref<8x32xbf16, #tpu.memory_space<vmem>>, vector<8x8xbf16>
    %cst_37 = arith.constant dense<0.000000e+00> : vector<8x8xf32>
    %67 = tpu.matmul %64, %65, %cst_37 {dimension_numbers = #tpu.dot_dimension_numbers<[1], [1], [0], [0], [0, 0, 1, 0], [], []>} : vector<8x8xbf16>, vector<8x8xbf16>, vector<8x8xf32> -> vector<8x8xf32>
    %cst_38 = arith.constant dense<0xFF800000> : vector<8xf32>
    %68 = vector.multi_reduction <maximumf>, %67, %cst_38 [1] : vector<8x8xf32> to vector<8xf32>
    %69 = vector.shape_cast %68 : vector<8xf32> to vector<8x1xf32>
    %70 = vector.broadcast %69 : vector<8x1xf32> to vector<8x8xf32>
    %71 = arith.subf %67, %70 : vector<8x8xf32>
    %72 = math.exp %71 : vector<8x8xf32>
    %cst_39 = arith.constant dense<0.000000e+00> : vector<8xf32>
    %73 = vector.multi_reduction <add>, %72, %cst_39 [1] : vector<8x8xf32> to vector<8xf32>
    %74 = vector.shape_cast %73 : vector<8xf32> to vector<8x1xf32>
    %75 = tpu.reciprocal %74 {approx = true} : vector<8x1xf32> -> vector<8x1xf32>
    %76 = vector.broadcast %75 : vector<8x1xf32> to vector<8x8xf32>
    %77 = arith.mulf %72, %76 : vector<8x8xf32>
    %78 = arith.truncf %77 : vector<8x8xf32> to vector<8x8xbf16>
    %cst_40 = arith.constant dense<0.000000e+00> : vector<8x8xf32>
    %79 = tpu.matmul %78, %66, %cst_40 {dimension_numbers = #tpu.dot_dimension_numbers<[1], [0], [0], [1], [0, 0, 1, 1], [], []>} : vector<8x8xbf16>, vector<8x8xbf16>, vector<8x8xf32> -> vector<8x8xf32>
    %80 = arith.truncf %79 : vector<8x8xf32> to vector<8x8xbf16>
    %c0_41 = arith.constant 0 : index
    %c24_42 = arith.constant 24 : index
    %81 = vector.load %arg13[%c0_41, %c24_42] : memref<8x32xbf16, #tpu.memory_space<vmem>>, vector<8x8xbf16>
    tpu.vector_store %arg13[%c0_41, %c24_42], %80 {strides = array<i32>} : memref<8x32xbf16, #tpu.memory_space<vmem>>, vector<8x8xbf16>,
    %c0_43 = arith.constant 0 : index
    %c0_44 = arith.constant 0 : index
    %82 = vector.load %arg13[%c0_43, %c0_44] : memref<8x32xbf16, #tpu.memory_space<vmem>>, vector<8x32xbf16>
    %c0_45 = arith.constant 0 : index
    %c0_46 = arith.constant 0 : index
    %83 = vector.load %arg8[%c0_45, %c0_46] : memref<32x32xbf16, #tpu.memory_space<vmem>>, vector<32x32xbf16>
    %cst_47 = arith.constant dense<0.000000e+00> : vector<8x32xf32>
    %84 = tpu.matmul %82, %83, %cst_47 {dimension_numbers = #tpu.dot_dimension_numbers<[1], [0], [0], [1], [0, 0, 1, 1], [], []>} : vector<8x32xbf16>, vector<32x32xbf16>, vector<8x32xf32> -> vector<8x32xf32>
    %c0_48 = arith.constant 0 : index
    %c0_49 = arith.constant 0 : index
    %85 = vector.load %arg9[%c0_48, %c0_49] : memref<1x32xf32, #tpu.memory_space<vmem>>, vector<1x32xf32>
    %86 = vector.broadcast %85 : vector<1x32xf32> to vector<8x32xf32>
    %87 = arith.addf %84, %86 : vector<8x32xf32>
    %88 = arith.truncf %87 : vector<8x32xf32> to vector<8x32xbf16>
    %c0_50 = arith.constant 0 : index
    %c0_51 = arith.constant 0 : index
    %c0_52 = arith.constant 0 : index
    %89 = vector.load %arg10[%c0_50, %c0_51, %c0_52] : memref<1x8x32xbf16, #tpu.memory_space<vmem>>, vector<1x8x32xbf16>
    %90 = vector.shape_cast %89 : vector<1x8x32xbf16> to vector<8x32xbf16>
    %91 = vector.shape_cast %88 : vector<8x32xbf16> to vector<1x8x32xbf16>
    tpu.vector_store %arg10[%c0_50, %c0_51, %c0_52], %91 {strides = array<i32>} : memref<1x8x32xbf16, #tpu.memory_space<vmem>>, vector<1x8x32xbf16>,
    return
  }
  func.func @transform_0(%arg0: i32, %arg1: i32) -> (i32, i32, i32) {
    %c0_i32 = arith.constant 0 : i32
    %c0_i32_0 = arith.constant 0 : i32
    return %arg0, %arg1, %c0_i32 : i32, i32, i32
  }
  func.func @transform_1(%arg0: i32, %arg1: i32) -> (i32, i32, i32) {
    %c0_i32 = arith.constant 0 : i32
    %c0_i32_0 = arith.constant 0 : i32
    %c0_i32_1 = arith.constant 0 : i32
    return %arg0, %c0_i32, %c0_i32_0 : i32, i32, i32
  }
  func.func @transform_2(%arg0: i32, %arg1: i32) -> (i32, i32, i32) {
    %c0_i32 = arith.constant 0 : i32
    %c0_i32_0 = arith.constant 0 : i32
    %c0_i32_1 = arith.constant 0 : i32
    return %arg0, %c0_i32, %c0_i32_0 : i32, i32, i32
  }
  func.func @transform_3(%arg0: i32, %arg1: i32) -> (i32, i32) {
    %c0_i32 = arith.constant 0 : i32
    %c0_i32_0 = arith.constant 0 : i32
    %c0_i32_1 = arith.constant 0 : i32
    return %c0_i32, %c0_i32_0 : i32, i32
  }
  func.func @transform_4(%arg0: i32, %arg1: i32) -> (i32, i32) {
    %c0_i32 = arith.constant 0 : i32
    %c0_i32_0 = arith.constant 0 : i32
    %c0_i32_1 = arith.constant 0 : i32
    return %c0_i32, %c0_i32_0 : i32, i32
  }
  func.func @transform_5(%arg0: i32, %arg1: i32) -> (i32, i32) {
    %c0_i32 = arith.constant 0 : i32
    %c0_i32_0 = arith.constant 0 : i32
    %c0_i32_1 = arith.constant 0 : i32
    return %c0_i32, %c0_i32_0 : i32, i32
  }
  func.func @transform_6(%arg0: i32, %arg1: i32) -> (i32, i32) {
    %c0_i32 = arith.constant 0 : i32
    %c0_i32_0 = arith.constant 0 : i32
    %c0_i32_1 = arith.constant 0 : i32
    return %c0_i32, %c0_i32_0 : i32, i32
  }
  func.func @transform_7(%arg0: i32, %arg1: i32) -> (i32, i32) {
    %c0_i32 = arith.constant 0 : i32
    %c0_i32_0 = arith.constant 0 : i32
    %c0_i32_1 = arith.constant 0 : i32
    return %c0_i32, %c0_i32_0 : i32, i32
  }
  func.func @transform_8(%arg0: i32, %arg1: i32) -> (i32, i32, i32) {
    %c0_i32 = arith.constant 0 : i32
    %c0_i32_0 = arith.constant 0 : i32
    return %arg0, %arg1, %c0_i32 : i32, i32, i32
  }
}

</mosaic_0001>

<llo_original>
// kernel: tpu_custom_call.1
$region0: #{tpu_custom_call.1}
  #allocation0 [shape = 'u32[]', space=smem, size = 0x4, offset = 0x4, fixed_abs, tag = 'smem constant byte address 0x4 - core index']
  #allocation1 [shape = 'u32[72,128]{1,0:T(1,128)}', space=vmem, size = 0x9000, scoped, tag = 'internal scratch']
  #allocation2 [shape = 'bf16[8,32]{1,0:T(8,128)(2,1)}', space=vmem, size = 0x800, scoped, tag = 'scratch operand']
  #allocation3 [shape = 'bf16[8,32]{1,0:T(8,128)(2,1)}', space=vmem, size = 0x800, scoped, tag = 'scratch operand']
  #allocation4 [shape = 'bf16[8,32]{1,0:T(8,128)(2,1)}', space=vmem, size = 0x800, scoped, tag = 'scratch operand']
  %s0 = inlined_call_operand.hbm [shape: bf16[2,8,32], index: 0, kind: input, shape index: {}]
  %s1 = inlined_call_operand.hbm [shape: bf16[2,8,32], index: 1, kind: input, shape index: {}]
  %s2 = inlined_call_operand.hbm [shape: bf16[2,8,32], index: 2, kind: input, shape index: {}]
  %s3 = inlined_call_operand.hbm [shape: bf16[32,32], index: 3, kind: input, shape index: {}]
  %s4 = inlined_call_operand.hbm [shape: bf16[32,32], index: 4, kind: input, shape index: {}]
  %s5 = inlined_call_operand.hbm [shape: bf16[32,32], index: 5, kind: input, shape index: {}]
  %s6 = inlined_call_operand.hbm [shape: bf16[32,32], index: 6, kind: input, shape index: {}]
  %s7 = inlined_call_operand.vmem [shape: f32[1,32], index: 7, kind: input, shape index: {}]
  %s8 = inlined_call_operand.hbm [shape: bf16[2,8,32], index: 8, kind: output, shape index: {}]
  %s9 = sld [smem:[#allocation0]]
  $region97: #{tpu_custom_call.1} parent=0
    _
  %s11 = ssub.s32 1, %s9
  %s12 = scalar_select 0, %s11, %s9
  $region1: #{tpu_custom_call.1} parent=0
    #allocation5 [shape = 'u8[4096]{0}', space=vmem, size = 0x1000, scoped, tag = 'input window, operand 0']
    #allocation6 [shape = 's32[2]{0}', space=sflag, size = 0x8, scoped, tag = 'scoped memory for tpu_custom_call.1']
    #allocation7 [shape = 's32[2]{0}', space=sflag, size = 0x8, scoped, tag = 'scoped memory for tpu_custom_call.1']
    #allocation8 [shape = 'u8[4096]{0}', space=vmem, size = 0x1000, scoped, tag = 'input window, operand 1']
    #allocation9 [shape = 's32[2]{0}', space=sflag, size = 0x8, scoped, tag = 'scoped memory for tpu_custom_call.1']
    #allocation10 [shape = 'u8[4096]{0}', space=vmem, size = 0x1000, scoped, tag = 'input window, operand 2']
    #allocation11 [shape = 'u8[8192]{0}', space=vmem, size = 0x2000, scoped, tag = 'input window, operand 3, single buffered']
    #allocation12 [shape = 's32[1]{0}', space=sflag, size = 0x4, scoped, tag = 'scoped memory for tpu_custom_call.1']
    #allocation13 [shape = 'u8[8192]{0}', space=vmem, size = 0x2000, scoped, tag = 'input window, operand 4, single buffered']
    #allocation14 [shape = 'u8[8192]{0}', space=vmem, size = 0x2000, scoped, tag = 'input window, operand 5, single buffered']
    #allocation15 [shape = 's32[1]{0}', space=sflag, size = 0x4, scoped, tag = 'scoped memory for tpu_custom_call.1']
    #allocation16 [shape = 'u8[8192]{0}', space=vmem, size = 0x2000, scoped, tag = 'input window, operand 6, single buffered']
    #allocation17 [shape = 'u8[4096]{0}', space=vmem, size = 0x1000, scoped, tag = 'output window, operand 0']
    %13 = vsyncpa [#allocation6], 0
    %s14 = scalar_lea.sflag [#allocation6], 1
    %15 = vsyncpa %s14, 0
    %16 = vsyncpa [#allocation9], 0
    %s17 = scalar_lea.sflag [#allocation9], 1
    %18 = vsyncpa %s17, 0
    %19 = vsyncpa [#allocation12], 0
    %20 = vsyncpa [#allocation15], 0
    %21 = vsyncpa [#allocation7], 0
    %s22 = scalar_lea.sflag [#allocation7], 1
    %23 = vsyncpa %s22, 0
    loop: start=0, step=1, limit=4
    $region2: #{tpu_custom_call.1} parent=1 // loop_pre_header
      _
    $region3: #{tpu_custom_call.1} parent=1 // loop_header
      %s25 = sphi 0, %s29
      %p26 = scmp.ge.s32.totalorder %s25, 4
      %s32 = sphi 0, %s44
      %s33 = sphi 0, %s40
      %s34 = sphi 0, %s32
      %s35 = sphi 0, %s33
      %s36 = sphi 0, %s34
      %s37 = sphi 0, %s35
      %s49 = sphi 0, %s51
      %s52 = sphi 0, %s49
      %s53 = sphi 0, %s52
      %s69 = sphi 0, %s53
      %s75 = sphi 0, %s77
      %s78 = sphi 0, %s75
      %s79 = sphi 0, %s78
      %s95 = sphi 0, %s79
      %s101 = sphi 0, %s103
      %s104 = sphi 0, %s101
      %s105 = sphi 0, %s104
      %s121 = sphi 0, %s105
      %s125 = sphi 0, %s125
      %s127 = sphi 0, %s125
      %s128 = sphi 0, %s127
      %s142 = sphi 0, %s128
      %s146 = sphi 0, %s146
      %s148 = sphi 0, %s146
      %s149 = sphi 0, %s148
      %s163 = sphi 0, %s149
      %s167 = sphi 0, %s167
      %s169 = sphi 0, %s167
      %s170 = sphi 0, %s169
      %s184 = sphi 0, %s170
      %s188 = sphi 0, %s188
      %s190 = sphi 0, %s188
      %s191 = sphi 0, %s190
      %s205 = sphi 0, %s191
      %s209 = sphi 0, %s209
      %s211 = sphi 0, %s209
      %s212 = sphi 0, %s211
      %s226 = sphi 0, %s212
      %s234 = sphi 0, %s236
      %s237 = sphi 0, %s234
      %s238 = sphi 0, %s237
      %s254 = sphi 0, %s238
    $region4: #{tpu_custom_call.1} parent=1 // loop_header_branch
      %28 = sbr.rel (%p26) target = $region8
    $region5: #{tpu_custom_call.1} parent=1 // loop_body
      %s30 = ssub.s32 %s25, 1
      %s31 = ssub.s32 %s25, 2
      %s38 = sadd.s32 1, %s33
      %p39 = scmp.ge.s32.totalorder %s38, 1
      %s40 = scalar_select %p39, 0, %s38
      %s41 = sadd.s32 1, %s32
      %s42 = scalar_select %p39, %s41, %s32
      %p43 = scmp.ge.s32.totalorder %s42, 2
      %s44 = scalar_select %p43, 0, %s42
      %s45 = ssub.s32 %s32, %s44
      %s46 = ssub.s32 %s33, %s40
      %s47 = sor.u32 %s45, %s46
      %p48 = scmp.eq.s32.totalorder %s47, 0
      %s50 = sadd.s32 %s49, 1
      %s51 = scalar_select %p48, %s49, %s50
      %p54 = pneg %p48
      %p55 = scmp.eq.s32.totalorder %s25, 1
      %p56 = por %p54, %p55
      %p57 = scmp.ne.s32.totalorder %s49, %s52
      %p58 = scmp.eq.s32.totalorder %s25, 0
      %p59 = por %p57, %p58
      %p60 = scmp.ne.s32.totalorder %s49, %s52
      %p61 = scmp.eq.s32.totalorder %s30, 1
      %p62 = por %p60, %p61
      %p63 = scmp.ne.s32.totalorder %s52, %s53
      %p64 = scmp.eq.s32.totalorder %s30, 0
      %p65 = por %p63, %p64
      %p66 = scmp.ne.s32.totalorder %s52, %s53
      %p67 = scmp.eq.s32.totalorder %s31, 1
      %p68 = por %p66, %p67
      %p70 = scmp.ne.s32.totalorder %s53, %s69
      %p71 = scmp.eq.s32.totalorder %s31, 0
      %p72 = por %p70, %p71
      %s73 = ssub.s32 %s32, %s44
      %p74 = scmp.eq.s32.totalorder %s73, 0
      %s76 = sadd.s32 %s75, 1
      %s77 = scalar_select %p74, %s75, %s76
      %p80 = pneg %p74
      %p81 = scmp.eq.s32.totalorder %s25, 1
      %p82 = por %p80, %p81
      %p83 = scmp.ne.s32.totalorder %s75, %s78
      %p84 = scmp.eq.s32.totalorder %s25, 0
      %p85 = por %p83, %p84
      %p86 = scmp.ne.s32.totalorder %s75, %s78
      %p87 = scmp.eq.s32.totalorder %s30, 1
      %p88 = por %p86, %p87
      %p89 = scmp.ne.s32.totalorder %s78, %s79
      %p90 = scmp.eq.s32.totalorder %s30, 0
      %p91 = por %p89, %p90
      %p92 = scmp.ne.s32.totalorder %s78, %s79
      %p93 = scmp.eq.s32.totalorder %s31, 1
      %p94 = por %p92, %p93
      %p96 = scmp.ne.s32.totalorder %s79, %s95
      %p97 = scmp.eq.s32.totalorder %s31, 0
      %p98 = por %p96, %p97
      %s99 = ssub.s32 %s32, %s44
      %p100 = scmp.eq.s32.totalorder %s99, 0
      %s102 = sadd.s32 %s101, 1
      %s103 = scalar_select %p100, %s101, %s102
      %p106 = pneg %p100
      %p107 = scmp.eq.s32.totalorder %s25, 1
      %p108 = por %p106, %p107
      %p109 = scmp.ne.s32.totalorder %s101, %s104
      %p110 = scmp.eq.s32.totalorder %s25, 0
      %p111 = por %p109, %p110
      %p112 = scmp.ne.s32.totalorder %s101, %s104
      %p113 = scmp.eq.s32.totalorder %s30, 1
      %p114 = por %p112, %p113
      %p115 = scmp.ne.s32.totalorder %s104, %s105
      %p116 = scmp.eq.s32.totalorder %s30, 0
      %p117 = por %p115, %p116
      %p118 = scmp.ne.s32.totalorder %s104, %s105
      %p119 = scmp.eq.s32.totalorder %s31, 1
      %p120 = por %p118, %p119
      %p122 = scmp.ne.s32.totalorder %s105, %s121
      %p123 = scmp.eq.s32.totalorder %s31, 0
      %p124 = por %p122, %p123
      %s126 = sadd.s32 %s125, 1
      %p129 = scmp.eq.s32.totalorder %s25, 1
      %p130 = scmp.ne.s32.totalorder %s125, %s127
      %p131 = scmp.eq.s32.totalorder %s25, 0
      %p132 = por %p130, %p131
      %p133 = scmp.ne.s32.totalorder %s125, %s127
      %p134 = scmp.eq.s32.totalorder %s30, 1
      %p135 = por %p133, %p134
      %p136 = scmp.ne.s32.totalorder %s127, %s128
      %p137 = scmp.eq.s32.totalorder %s30, 0
      %p138 = por %p136, %p137
      %p139 = scmp.ne.s32.totalorder %s127, %s128
      %p140 = scmp.eq.s32.totalorder %s31, 1
      %p141 = por %p139, %p140
      %p143 = scmp.ne.s32.totalorder %s128, %s142
      %p144 = scmp.eq.s32.totalorder %s31, 0
      %p145 = por %p143, %p144
      %s147 = sadd.s32 %s146, 1
      %p150 = scmp.eq.s32.totalorder %s25, 1
      %p151 = scmp.ne.s32.totalorder %s146, %s148
      %p152 = scmp.eq.s32.totalorder %s25, 0
      %p153 = por %p151, %p152
      %p154 = scmp.ne.s32.totalorder %s146, %s148
      %p155 = scmp.eq.s32.totalorder %s30, 1
      %p156 = por %p154, %p155
      %p157 = scmp.ne.s32.totalorder %s148, %s149
      %p158 = scmp.eq.s32.totalorder %s30, 0
      %p159 = por %p157, %p158
      %p160 = scmp.ne.s32.totalorder %s148, %s149
      %p161 = scmp.eq.s32.totalorder %s31, 1
      %p162 = por %p160, %p161
      %p164 = scmp.ne.s32.totalorder %s149, %s163
      %p165 = scmp.eq.s32.totalorder %s31, 0
      %p166 = por %p164, %p165
      %s168 = sadd.s32 %s167, 1
      %p171 = scmp.eq.s32.totalorder %s25, 1
      %p172 = scmp.ne.s32.totalorder %s167, %s169
      %p173 = scmp.eq.s32.totalorder %s25, 0
      %p174 = por %p172, %p173
      %p175 = scmp.ne.s32.totalorder %s167, %s169
      %p176 = scmp.eq.s32.totalorder %s30, 1
      %p177 = por %p175, %p176
      %p178 = scmp.ne.s32.totalorder %s169, %s170
      %p179 = scmp.eq.s32.totalorder %s30, 0
      %p180 = por %p178, %p179
      %p181 = scmp.ne.s32.totalorder %s169, %s170
      %p182 = scmp.eq.s32.totalorder %s31, 1
      %p183 = por %p181, %p182
      %p185 = scmp.ne.s32.totalorder %s170, %s184
      %p186 = scmp.eq.s32.totalorder %s31, 0
      %p187 = por %p185, %p186
      %s189 = sadd.s32 %s188, 1
      %p192 = scmp.eq.s32.totalorder %s25, 1
      %p193 = scmp.ne.s32.totalorder %s188, %s190
      %p194 = scmp.eq.s32.totalorder %s25, 0
      %p195 = por %p193, %p194
      %p196 = scmp.ne.s32.totalorder %s188, %s190
      %p197 = scmp.eq.s32.totalorder %s30, 1
      %p198 = por %p196, %p197
      %p199 = scmp.ne.s32.totalorder %s190, %s191
      %p200 = scmp.eq.s32.totalorder %s30, 0
      %p201 = por %p199, %p200
      %p202 = scmp.ne.s32.totalorder %s190, %s191
      %p203 = scmp.eq.s32.totalorder %s31, 1
      %p204 = por %p202, %p203
      %p206 = scmp.ne.s32.totalorder %s191, %s205
      %p207 = scmp.eq.s32.totalorder %s31, 0
      %p208 = por %p206, %p207
      %s210 = sadd.s32 %s209, 1
      %p213 = scmp.eq.s32.totalorder %s25, 1
      %p214 = scmp.ne.s32.totalorder %s209, %s211
      %p215 = scmp.eq.s32.totalorder %s25, 0
      %p216 = por %p214, %p215
      %p217 = scmp.ne.s32.totalorder %s209, %s211
      %p218 = scmp.eq.s32.totalorder %s30, 1
      %p219 = por %p217, %p218
      %p220 = scmp.ne.s32.totalorder %s211, %s212
      %p221 = scmp.eq.s32.totalorder %s30, 0
      %p222 = por %p220, %p221
      %p223 = scmp.ne.s32.totalorder %s211, %s212
      %p224 = scmp.eq.s32.totalorder %s31, 1
      %p225 = por %p223, %p224
      %p227 = scmp.ne.s32.totalorder %s212, %s226
      %p228 = scmp.eq.s32.totalorder %s31, 0
      %p229 = por %p227, %p228
      %s230 = ssub.s32 %s32, %s44
      %s231 = ssub.s32 %s33, %s40
      %s232 = sor.u32 %s230, %s231
      %p233 = scmp.eq.s32.totalorder %s232, 0
      %s235 = sadd.s32 %s234, 1
      %s236 = scalar_select %p233, %s234, %s235
      %p239 = pneg %p233
      %p240 = scmp.eq.s32.totalorder %s25, 1
      %p241 = por %p239, %p240
      %p242 = scmp.ne.s32.totalorder %s234, %s237
      %p243 = scmp.eq.s32.totalorder %s25, 0
      %p244 = por %p242, %p243
      %p245 = scmp.ne.s32.totalorder %s234, %s237
      %p246 = scmp.eq.s32.totalorder %s30, 1
      %p247 = por %p245, %p246
      %p248 = scmp.ne.s32.totalorder %s237, %s238
      %p249 = scmp.eq.s32.totalorder %s30, 0
      %p250 = por %p248, %p249
      %p251 = scmp.ne.s32.totalorder %s237, %s238
      %p252 = scmp.eq.s32.totalorder %s31, 1
      %p253 = por %p251, %p252
      %p255 = scmp.ne.s32.totalorder %s238, %s254
      %p256 = scmp.eq.s32.totalorder %s31, 0
      %p257 = por %p255, %p256
      %p258 = scmp.le.s32.totalorder 1, %s25
      %p259 = scmp.lt.s32.totalorder %s25, 3
      %p260 = pnand %p258, %p259
      %p261 = pneg %p260
      // Predicated region
      $region9: #{tpu_custom_call.1} parent=5 // pred_check
        _
      $region10: #{tpu_custom_call.1} parent=5 // pred_check_branch
        %263 = sbr.rel (%p260) target = $region12
      $region11: #{tpu_custom_call.1} parent=5 // pred_region
        %s264 = ssub.s32 %s25, 1
        // Predicated region
        $region13: #{tpu_custom_call.1} parent=11 // pred_check
          %p265 = pneg %p138
        $region14: #{tpu_custom_call.1} parent=11 // pred_check_branch
          %267 = sbr.rel (%p265) target = $region16
        $region15: #{tpu_custom_call.1} parent=11 // pred_region
          %269 = vsyncadd [#allocation12], 0
          %s270 = sshll.u32 %s3, 4
          %s271 = int_to_ptr.hbm [resolvable:$true] %s270
          %s272 = sshll.u32 [#allocation11], 4
          %s273 = int_to_ptr.vmem [resolvable:$true] %s272
          %278 = dma.hbm_to_vmem [thread:$0]  %s271, 256, %s273, [#allocation12], 64, 64, 4
        $region16: #{tpu_custom_call.1} parent=11 // pred_fallthru
          _
        // Predicated region
        $region17: #{tpu_custom_call.1} parent=11 // pred_check
          %p279 = pneg %p159
        $region18: #{tpu_custom_call.1} parent=11 // pred_check_branch
          %281 = sbr.rel (%p279) target = $region20
        $region19: #{tpu_custom_call.1} parent=11 // pred_region
          %283 = vsyncadd [#allocation12], 0
          %s284 = sshll.u32 %s4, 4
          %s285 = int_to_ptr.hbm [resolvable:$true] %s284
          %s286 = sshll.u32 [#allocation13], 4
          %s287 = int_to_ptr.vmem [resolvable:$true] %s286
          %292 = dma.hbm_to_vmem [thread:$0]  %s285, 256, %s287, [#allocation12], 64, 64, 4
        $region20: #{tpu_custom_call.1} parent=11 // pred_fallthru
          _
        // Predicated region
        $region21: #{tpu_custom_call.1} parent=11 // pred_check
          %p293 = pneg %p180
        $region22: #{tpu_custom_call.1} parent=11 // pred_check_branch
          %295 = sbr.rel (%p293) target = $region24
        $region23: #{tpu_custom_call.1} parent=11 // pred_region
          %297 = vsyncadd [#allocation15], 0
          %s298 = sshll.u32 %s5, 4
          %s299 = int_to_ptr.hbm [resolvable:$true] %s298
          %s300 = sshll.u32 [#allocation14], 4
          %s301 = int_to_ptr.vmem [resolvable:$true] %s300
          %306 = dma.hbm_to_vmem [thread:$0]  %s299, 256, %s301, [#allocation15], 64, 64, 4
        $region24: #{tpu_custom_call.1} parent=11 // pred_fallthru
          _
        // Predicated region
        $region25: #{tpu_custom_call.1} parent=11 // pred_check
          %p307 = pneg %p201
        $region26: #{tpu_custom_call.1} parent=11 // pred_check_branch
          %309 = sbr.rel (%p307) target = $region28
        $region27: #{tpu_custom_call.1} parent=11 // pred_region
          %311 = vsyncadd [#allocation15], 0
          %s312 = sshll.u32 %s6, 4
          %s313 = int_to_ptr.hbm [resolvable:$true] %s312
          %s314 = sshll.u32 [#allocation16], 4
          %s315 = int_to_ptr.vmem [resolvable:$true] %s314
          %320 = dma.hbm_to_vmem [thread:$0]  %s313, 256, %s315, [#allocation15], 64, 64, 4
        $region28: #{tpu_custom_call.1} parent=11 // pred_fallthru
          _
        // Predicated region
        $region29: #{tpu_custom_call.1} parent=11 // pred_check
          %p321 = pneg %p222
        $region30: #{tpu_custom_call.1} parent=11 // pred_check_branch
          %323 = sbr.rel (%p321) target = $region32
        $region31: #{tpu_custom_call.1} parent=11 // pred_region
          _
        $region32: #{tpu_custom_call.1} parent=11 // pred_fallthru
          _
      $region12: #{tpu_custom_call.1} parent=5 // pred_fallthru
        _
      %p324 = scmp.lt.s32.totalorder %s25, 2
      // Predicated region
      $region33: #{tpu_custom_call.1} parent=5 // pred_check
        %p325 = pneg %p324
      $region34: #{tpu_custom_call.1} parent=5 // pred_check_branch
        %327 = sbr.rel (%p325) target = $region36
      $region35: #{tpu_custom_call.1} parent=5 // pred_region
        // Predicated region
        $region37: #{tpu_custom_call.1} parent=35 // pred_check
          %p328 = pneg %p59
        $region38: #{tpu_custom_call.1} parent=35 // pred_check_branch
          %330 = sbr.rel (%p328) target = $region40
        $region39: #{tpu_custom_call.1} parent=35 // pred_region
          %s331 = sand.u32 %s49, 1
          %s332 = scalar_lea.sflag [#allocation6], %s331
          %s333 = sand.u32 %s49, 1
          %s334 = smul.addr %s333, 4
          %s335 = scalar_lea.vmem [#allocation5], %s334
          %337 = vsyncadd %s332, 0
          %s338 = sadd.s32 %s33, %s32
          %s339 = smul.addr %s338, 4
          %s340 = scalar_lea.hbm %s0, %s339
          %s342 = sshll.u32 %s340, 4
          %s343 = int_to_ptr.hbm [resolvable:$true] %s342
          %s344 = sshll.u32 %s335, 4
          %s345 = int_to_ptr.vmem [resolvable:$true] %s344
          %347 = dma.hbm_to_vmem [thread:$0]  %s343, 64, %s345, %s332
        $region40: #{tpu_custom_call.1} parent=35 // pred_fallthru
          _
        // Predicated region
        $region41: #{tpu_custom_call.1} parent=35 // pred_check
          %p348 = pneg %p85
        $region42: #{tpu_custom_call.1} parent=35 // pred_check_branch
          %350 = sbr.rel (%p348) target = $region44
        $region43: #{tpu_custom_call.1} parent=35 // pred_region
          %s351 = sand.u32 %s25, 1
          %s352 = scalar_lea.sflag [#allocation9], %s351
          %s353 = sand.u32 %s75, 1
          %s354 = smul.addr %s353, 4
          %s355 = scalar_lea.vmem [#allocation8], %s354
          %357 = vsyncadd %s352, 0
          %s358 = smul.addr %s32, 4
          %s359 = scalar_lea.hbm %s1, %s358
          %s361 = sshll.u32 %s359, 4
          %s362 = int_to_ptr.hbm [resolvable:$true] %s361
          %s363 = sshll.u32 %s355, 4
          %s364 = int_to_ptr.vmem [resolvable:$true] %s363
          %366 = dma.hbm_to_vmem [thread:$0]  %s362, 64, %s364, %s352
        $region44: #{tpu_custom_call.1} parent=35 // pred_fallthru
          _
        // Predicated region
        $region45: #{tpu_custom_call.1} parent=35 // pred_check
          %p367 = pneg %p111
        $region46: #{tpu_custom_call.1} parent=35 // pred_check_branch
          %369 = sbr.rel (%p367) target = $region48
        $region47: #{tpu_custom_call.1} parent=35 // pred_region
          %s370 = sand.u32 %s25, 1
          %s371 = scalar_lea.sflag [#allocation9], %s370
          %s372 = sand.u32 %s101, 1
          %s373 = smul.addr %s372, 4
          %s374 = scalar_lea.vmem [#allocation10], %s373
          %376 = vsyncadd %s371, 0
          %s377 = smul.addr %s32, 4
          %s378 = scalar_lea.hbm %s2, %s377
          %s380 = sshll.u32 %s378, 4
          %s381 = int_to_ptr.hbm [resolvable:$true] %s380
          %s382 = sshll.u32 %s374, 4
          %s383 = int_to_ptr.vmem [resolvable:$true] %s382
          %385 = dma.hbm_to_vmem [thread:$0]  %s381, 64, %s383, %s371
        $region48: #{tpu_custom_call.1} parent=35 // pred_fallthru
          _
      $region36: #{tpu_custom_call.1} parent=5 // pred_fallthru
        _
      %p386 = scmp.le.s32.totalorder 1, %s25
      %p387 = scmp.lt.s32.totalorder %s25, 3
      %p388 = pnand %p386, %p387
      %p389 = pneg %p388
      // Predicated region
      $region49: #{tpu_custom_call.1} parent=5 // pred_check
        _
      $region50: #{tpu_custom_call.1} parent=5 // pred_check_branch
        %391 = sbr.rel (%p388) target = $region52
      $region51: #{tpu_custom_call.1} parent=5 // pred_region
        %s392 = ssub.s32 %s25, 1
        %s393 = sand.u32 %s52, 1
        %s394 = scalar_lea.sflag [#allocation6], %s393
        %s395 = sand.u32 %s52, 1
        %s396 = smul.addr %s395, 4
        %s397 = scalar_lea.vmem [#allocation5], %s396
        // Predicated region
        $region53: #{tpu_custom_call.1} parent=51 // pred_check
          %p398 = pneg %p65
        $region54: #{tpu_custom_call.1} parent=51 // pred_check_branch
          %400 = sbr.rel (%p398) target = $region56
        $region55: #{tpu_custom_call.1} parent=51 // pred_region
          %402 = dma.done %s394, 64
        $region56: #{tpu_custom_call.1} parent=51 // pred_fallthru
          _
        %s403 = sand.u32 %s30, 1
        %s404 = scalar_lea.sflag [#allocation9], %s403
        %s405 = sand.u32 %s78, 1
        %s406 = smul.addr %s405, 4
        %s407 = scalar_lea.vmem [#allocation8], %s406
        // Predicated region
        $region57: #{tpu_custom_call.1} parent=51 // pred_check
          %p408 = pneg %p91
        $region58: #{tpu_custom_call.1} parent=51 // pred_check_branch
          %410 = sbr.rel (%p408) target = $region60
        $region59: #{tpu_custom_call.1} parent=51 // pred_region
          %412 = dma.done %s404, 64
        $region60: #{tpu_custom_call.1} parent=51 // pred_fallthru
          _
        %s413 = sand.u32 %s30, 1
        %s414 = scalar_lea.sflag [#allocation9], %s413
        %s415 = sand.u32 %s104, 1
        %s416 = smul.addr %s415, 4
        %s417 = scalar_lea.vmem [#allocation10], %s416
        // Predicated region
        $region61: #{tpu_custom_call.1} parent=51 // pred_check
          %p418 = pneg %p117
        $region62: #{tpu_custom_call.1} parent=51 // pred_check_branch
          %420 = sbr.rel (%p418) target = $region64
        $region63: #{tpu_custom_call.1} parent=51 // pred_region
          %422 = dma.done %s414, 64
        $region64: #{tpu_custom_call.1} parent=51 // pred_fallthru
          _
        // Predicated region
        $region65: #{tpu_custom_call.1} parent=51 // pred_check
          %p423 = pneg %p138
        $region66: #{tpu_custom_call.1} parent=51 // pred_check_branch
          %425 = sbr.rel (%p423) target = $region68
        $region67: #{tpu_custom_call.1} parent=51 // pred_region
          %427 = dma.done [#allocation12], 256
        $region68: #{tpu_custom_call.1} parent=51 // pred_fallthru
          _
        // Predicated region
        $region69: #{tpu_custom_call.1} parent=51 // pred_check
          %p428 = pneg %p159
        $region70: #{tpu_custom_call.1} parent=51 // pred_check_branch
          %430 = sbr.rel (%p428) target = $region72
        $region71: #{tpu_custom_call.1} parent=51 // pred_region
          %432 = dma.done [#allocation12], 256
        $region72: #{tpu_custom_call.1} parent=51 // pred_fallthru
          _
        // Predicated region
        $region73: #{tpu_custom_call.1} parent=51 // pred_check
          %p433 = pneg %p180
        $region74: #{tpu_custom_call.1} parent=51 // pred_check_branch
          %435 = sbr.rel (%p433) target = $region76
        $region75: #{tpu_custom_call.1} parent=51 // pred_region
          %437 = dma.done [#allocation15], 256
        $region76: #{tpu_custom_call.1} parent=51 // pred_fallthru
          _
        // Predicated region
        $region77: #{tpu_custom_call.1} parent=51 // pred_check
          %p438 = pneg %p201
        $region78: #{tpu_custom_call.1} parent=51 // pred_check_branch
          %440 = sbr.rel (%p438) target = $region80
        $region79: #{tpu_custom_call.1} parent=51 // pred_region
          %442 = dma.done [#allocation15], 256
        $region80: #{tpu_custom_call.1} parent=51 // pred_fallthru
          _
        %s443 = sand.u32 %s52, 1
        %s444 = scalar_lea.sflag [#allocation6], %s443
        %s445 = sand.u32 %s52, 1
        %s446 = smul.addr %s445, 4
        %s447 = scalar_lea.vmem [#allocation5], %s446
        %p448 = pneg %p65
        %p449 = pneg %p62
        %s450 = sand.u32 %s30, 1
        %s451 = scalar_lea.sflag [#allocation9], %s450
        %s452 = sand.u32 %s78, 1
        %s453 = smul.addr %s452, 4
        %s454 = scalar_lea.vmem [#allocation8], %s453
        %p455 = pneg %p91
        %p456 = pneg %p88
        %s457 = sand.u32 %s30, 1
        %s458 = scalar_lea.sflag [#allocation9], %s457
        %s459 = sand.u32 %s104, 1
        %s460 = smul.addr %s459, 4
        %s461 = scalar_lea.vmem [#allocation10], %s460
        %p462 = pneg %p117
        %p463 = pneg %p114
        %p464 = pneg %p138
        %p465 = pneg %p135
        %p466 = pneg %p159
        %p467 = pneg %p156
        %p468 = pneg %p180
        %p469 = pneg %p177
        %p470 = pneg %p201
        %p471 = pneg %p198
        %p472 = pneg %p222
        %p473 = pneg %p219
        %p474 = pneg %p250
        %p475 = pneg %p247
        %s476 = sand.u32 %s237, 1
        %s477 = scalar_lea.sflag [#allocation7], %s476
        %s478 = sand.u32 %s237, 1
        %s479 = smul.addr %s478, 4
        %s480 = scalar_lea.vmem [#allocation17], %s479
        %p482 = scmp.eq.s32.totalorder %s35, 0
        // Predicated region
        $region81: #{tpu_custom_call.1} parent=51 // pred_check
          %p483 = pneg %p482
        $region82: #{tpu_custom_call.1} parent=51 // pred_check_branch
          %485 = sbr.rel (%p483) target = $region84
        $region83: #{tpu_custom_call.1} parent=51 // pred_region
          %v486 = vld [vmem:[%s407] sm:$0xf]
          %v487 = vld [vmem:[#allocation13] sm:$0xf]
          %v488 = vld [vmem:[#allocation13 + $0x4] sm:$0xf]
          %v489 = vld [vmem:[#allocation13 + $0x8] sm:$0xf]
          %v490 = vld [vmem:[#allocation13 + $0xc] sm:$0xf]
          %v495 = vunpack.c.l.b16 %v487
          %v496 = vunpack.c.l.b16 %v488
          %v497 = vunpack.c.l.b16 %v489
          %v498 = vunpack.c.l.b16 %v490
          %v499 = vpack.c.b16 %v496, %v495
          %v500 = vpack.c.b16 %v498, %v497
          %vm503 = vcmask 261120
          %v505 = vsel %vm503, %v486, 0
          %507 = vmatpush.bf16.msra.mxu0 0
          %508 = vmatpush.bf16.msra.mxu0 0
          %509 = vmatpush.bf16.msra.mxu0 0
          %510 = vmatpush.bf16.msra.mxu0 0
          %511 = vmatpush.bf16.msra.mxu0 0
          %512 = vmatpush.bf16.msra.mxu0 0
          %513 = vmatpush.bf16.msra.mxu0 %v500
          %514 = vmatpush.bf16.msra.mxu0 %v499
          %515 = vmatmul.bf16.gmra.mxu0 %v505
          %v516 = vpop.f32.mrf.mxu0
          %v517 = vadd.f32 0.0, %v516
          %v518 = vpop.f32.mrf.mxu0
          %519 = vdwg.mxu0
          %v520 = vpack.c.bf16 %v517, %v517
          %vm521 = vcmask 257024
          %522 = vst.msk [vmem:[#allocation2] sm:$0xf] %vm521, %v520
          %v523 = vld [vmem:[%s417] sm:$0xf]
          %v524 = vld [vmem:[#allocation14] sm:$0xf]
          %v525 = vld [vmem:[#allocation14 + $0x4] sm:$0xf]
          %v526 = vld [vmem:[#allocation14 + $0x8] sm:$0xf]
          %v527 = vld [vmem:[#allocation14 + $0xc] sm:$0xf]
          %v532 = vunpack.c.l.b16 %v524
          %v533 = vunpack.c.l.b16 %v525
          %v534 = vunpack.c.l.b16 %v526
          %v535 = vunpack.c.l.b16 %v527
          %v536 = vpack.c.b16 %v533, %v532
          %v537 = vpack.c.b16 %v535, %v534
          %v541 = vsel %vm503, %v523, 0
          %543 = vmatpush.bf16.msra.mxu0 0
          %544 = vmatpush.bf16.msra.mxu0 0
          %545 = vmatpush.bf16.msra.mxu0 0
          %546 = vmatpush.bf16.msra.mxu0 0
          %547 = vmatpush.bf16.msra.mxu0 0
          %548 = vmatpush.bf16.msra.mxu0 0
          %549 = vmatpush.bf16.msra.mxu0 %v537
          %550 = vmatpush.bf16.msra.mxu0 %v536
          %551 = vmatmul.bf16.gmra.mxu0 %v541
          %v552 = vpop.f32.mrf.mxu0
          %v553 = vadd.f32 0.0, %v552
          %v554 = vpop.f32.mrf.mxu0
          %555 = vdwg.mxu0
          %v556 = vpack.c.bf16 %v553, %v553
          %557 = vst.msk [vmem:[#allocation3] sm:$0xf] %vm521, %v556
        $region84: #{tpu_custom_call.1} parent=51 // pred_fallthru
          _
        %v558 = vld [vmem:[%s397] sm:$0xf]
        %v559 = vld [vmem:[#allocation11] sm:$0xf]
        %v560 = vld [vmem:[#allocation11 + $0x4] sm:$0xf]
        %v561 = vld [vmem:[#allocation11 + $0x8] sm:$0xf]
        %v562 = vld [vmem:[#allocation11 + $0xc] sm:$0xf]
        %v567 = vunpack.c.l.b16 %v559
        %v568 = vunpack.c.l.b16 %v560
        %v569 = vunpack.c.l.b16 %v561
        %v570 = vunpack.c.l.b16 %v562
        %v571 = vpack.c.b16 %v568, %v567
        %v572 = vpack.c.b16 %v570, %v569
        %vm575 = vcmask 261120
        %v577 = vsel %vm575, %v558, 0
        %579 = vmatpush.bf16.msra.mxu0 0
        %580 = vmatpush.bf16.msra.mxu0 0
        %581 = vmatpush.bf16.msra.mxu0 0
        %582 = vmatpush.bf16.msra.mxu0 0
        %583 = vmatpush.bf16.msra.mxu0 0
        %584 = vmatpush.bf16.msra.mxu0 0
        %585 = vmatpush.bf16.msra.mxu0 %v572
        %586 = vmatpush.bf16.msra.mxu0 %v571
        %587 = vmatmul.bf16.gmra.mxu0 %v577
        %v588 = vpop.f32.mrf.mxu0
        %v589 = vadd.f32 0.0, %v588
        %v590 = vpop.f32.mrf.mxu0
        %591 = vdwg.mxu0
        %v592 = vmul.f32 %v589, 0.35355338
        %v593 = vpack.c.bf16 %v592, %v592
        %v594 = vld [vmem:[#allocation2] sm:$0xf]
        %v595 = vld [vmem:[#allocation3] sm:$0xf]
        %vm596 = vcmask 64512
        %v598 = vsel %vm596, %v593, 0
        %v601 = vsel %vm596, %v594, 0
        %603 = vmatpush.bf16.xpose.msra.mxu0 0
        %604 = vmatpush.bf16.xpose.msra.mxu0 0
        %605 = vmatpush.bf16.xpose.msra.mxu0 0
        %606 = vmatpush.bf16.xpose.msra.mxu0 0
        %607 = vmatpush.bf16.xpose.msra.mxu0 0
        %608 = vmatpush.bf16.xpose.msra.mxu0 0
        %609 = vmatpush.bf16.xpose.msra.mxu0 0
        %610 = vmatpush.bf16.xpose.msra.mxu0 %v601
        %611 = vmatmul.bf16.gmra.mxu0 %v598
        %v612 = vpop.f32.mrf.mxu0
        %v613 = vadd.f32 0.0, %v612
        %v614 = vpop.f32.mrf.mxu0
        %615 = vdwg.mxu0
        %v616 = vsel %vm596, %v613, -inf
        %617 = vmax.xlane.f32.xlu0 %v616
        %v618 = vpop.xlane.xlu0 %617
        %v619 = vsub.f32 %v613, %v618
        %v620 = vmul.f32 %v619, 1.442695
        %v621 = vpow.pop %v620
        %v622 = vsel %vm596, %v621, 0.0
        %623 = vadd.xlane.f32.xlu0 %v622
        %v624 = vpop.xlane.xlu0 %623
        %v625 = vrcp.pop %v624
        %v626 = vmul.f32 %v621, %v625
        %v627 = vpack.c.bf16 %v626, %v626
        %v629 = vsel %vm596, %v627, 0
        %vm631 = vcmask 1043456
        %v633 = vsel %vm631, %v595, 0
        %635 = vmatpush.bf16.msra.mxu0 0
        %636 = vmatpush.bf16.msra.mxu0 0
        %637 = vmatpush.bf16.msra.mxu0 0
        %638 = vmatpush.bf16.msra.mxu0 0
        %639 = vmatpush.bf16.msra.mxu0 0
        %640 = vmatpush.bf16.msra.mxu0 0
        %641 = vmatpush.bf16.msra.mxu0 0
        %642 = vmatpush.bf16.msra.mxu0 %v633
        %643 = vmatmul.bf16.gmra.mxu0 %v629
        %v644 = vpop.f32.mrf.mxu0
        %v645 = vadd.f32 0.0, %v644
        %v646 = vpop.f32.mrf.mxu0
        %647 = vdwg.mxu0
        %v648 = vpack.c.bf16 %v645, %v645
        %vm649 = vcmask 60416
        %650 = vst.msk [vmem:[#allocation4] sm:$0xf] %vm649, %v648
        %v651 = vld [vmem:[#allocation2] sm:$0xf]
        %v652 = vld [vmem:[#allocation3] sm:$0xf]
        %v654 = vunpack.c.l.b16 %v593
        %v655 = vpack.c.b16 %v654, %v654
        %656 = vrot.lane.b32.xlu0 %v655, 120
        %v657 = vpop.permute.xlu0 %656
        %v659 = vunpack.c.l.b16 %v651
        %v660 = vpack.c.b16 %v659, %v659
        %661 = vrot.lane.b32.xlu0 %v660, 120
        %v662 = vpop.permute.xlu0 %661
        %v664 = vsel %vm596, %v657, 0
        %v667 = vsel %vm596, %v662, 0
        %669 = vmatpush.bf16.xpose.msra.mxu0 0
        %670 = vmatpush.bf16.xpose.msra.mxu0 0
        %671 = vmatpush.bf16.xpose.msra.mxu0 0
        %672 = vmatpush.bf16.xpose.msra.mxu0 0
        %673 = vmatpush.bf16.xpose.msra.mxu0 0
        %674 = vmatpush.bf16.xpose.msra.mxu0 0
        %675 = vmatpush.bf16.xpose.msra.mxu0 0
        %676 = vmatpush.bf16.xpose.msra.mxu0 %v667
        %677 = vmatmul.bf16.gmra.mxu0 %v664
        %v678 = vpop.f32.mrf.mxu0
        %v679 = vadd.f32 0.0, %v678
        %v680 = vpop.f32.mrf.mxu0
        %681 = vdwg.mxu0
        %v682 = vsel %vm596, %v679, -inf
        %683 = vmax.xlane.f32.xlu0 %v682
        %v684 = vpop.xlane.xlu0 %683
        %v685 = vsub.f32 %v679, %v684
        %v686 = vmul.f32 %v685, 1.442695
        %v687 = vpow.pop %v686
        %v688 = vsel %vm596, %v687, 0.0
        %689 = vadd.xlane.f32.xlu0 %v688
        %v690 = vpop.xlane.xlu0 %689
        %v691 = vrcp.pop %v690
        %v692 = vmul.f32 %v687, %v691
        %v693 = vpack.c.bf16 %v692, %v692
        %v695 = vunpack.c.l.b16 %v652
        %v696 = vpack.c.b16 %v695, %v695
        %697 = vrot.lane.b32.xlu0 %v696, 120
        %v698 = vpop.permute.xlu0 %697
        %v700 = vsel %vm596, %v693, 0
        %v703 = vsel %vm631, %v698, 0
        %705 = vmatpush.bf16.msra.mxu0 0
        %706 = vmatpush.bf16.msra.mxu0 0
        %707 = vmatpush.bf16.msra.mxu0 0
        %708 = vmatpush.bf16.msra.mxu0 0
        %709 = vmatpush.bf16.msra.mxu0 0
        %710 = vmatpush.bf16.msra.mxu0 0
        %711 = vmatpush.bf16.msra.mxu0 0
        %712 = vmatpush.bf16.msra.mxu0 %v703
        %713 = vmatmul.bf16.gmra.mxu0 %v700
        %v714 = vpop.f32.mrf.mxu0
        %v715 = vadd.f32 0.0, %v714
        %v716 = vpop.f32.mrf.mxu0
        %717 = vdwg.mxu0
        %v718 = vpack.c.bf16 %v715, %v715
        %720 = vrot.lane.b32.xlu0 %v718, 8
        %v721 = vpop.permute.xlu0 %720
        %vm723 = vcmask 126016
        %724 = vst.msk [vmem:[#allocation4] sm:$0xf] %vm723, %v721
        %v725 = vld [vmem:[#allocation2] sm:$0xf]
        %v726 = vld [vmem:[#allocation3] sm:$0xf]
        %727 = vrot.lane.b32.xlu0 %v655, 112
        %v728 = vpop.permute.xlu0 %727
        %v730 = vunpack.c.l.b16 %v725
        %v731 = vpack.c.b16 %v730, %v730
        %732 = vrot.lane.b32.xlu0 %v731, 112
        %v733 = vpop.permute.xlu0 %732
        %v735 = vsel %vm596, %v728, 0
        %v738 = vsel %vm596, %v733, 0
        %740 = vmatpush.bf16.xpose.msra.mxu0 0
        %741 = vmatpush.bf16.xpose.msra.mxu0 0
        %742 = vmatpush.bf16.xpose.msra.mxu0 0
        %743 = vmatpush.bf16.xpose.msra.mxu0 0
        %744 = vmatpush.bf16.xpose.msra.mxu0 0
        %745 = vmatpush.bf16.xpose.msra.mxu0 0
        %746 = vmatpush.bf16.xpose.msra.mxu0 0
        %747 = vmatpush.bf16.xpose.msra.mxu0 %v738
        %748 = vmatmul.bf16.gmra.mxu0 %v735
        %v749 = vpop.f32.mrf.mxu0
        %v750 = vadd.f32 0.0, %v749
        %v751 = vpop.f32.mrf.mxu0
        %752 = vdwg.mxu0
        %v753 = vsel %vm596, %v750, -inf
        %754 = vmax.xlane.f32.xlu0 %v753
        %v755 = vpop.xlane.xlu0 %754
        %v756 = vsub.f32 %v750, %v755
        %v757 = vmul.f32 %v756, 1.442695
        %v758 = vpow.pop %v757
        %v759 = vsel %vm596, %v758, 0.0
        %760 = vadd.xlane.f32.xlu0 %v759
        %v761 = vpop.xlane.xlu0 %760
        %v762 = vrcp.pop %v761
        %v763 = vmul.f32 %v758, %v762
        %v764 = vpack.c.bf16 %v763, %v763
        %v766 = vunpack.c.l.b16 %v726
        %v767 = vpack.c.b16 %v766, %v766
        %768 = vrot.lane.b32.xlu0 %v767, 112
        %v769 = vpop.permute.xlu0 %768
        %v771 = vsel %vm596, %v764, 0
        %v774 = vsel %vm631, %v769, 0
        %776 = vmatpush.bf16.msra.mxu0 0
        %777 = vmatpush.bf16.msra.mxu0 0
        %778 = vmatpush.bf16.msra.mxu0 0
        %779 = vmatpush.bf16.msra.mxu0 0
        %780 = vmatpush.bf16.msra.mxu0 0
        %781 = vmatpush.bf16.msra.mxu0 0
        %782 = vmatpush.bf16.msra.mxu0 0
        %783 = vmatpush.bf16.msra.mxu0 %v774
        %784 = vmatmul.bf16.gmra.mxu0 %v771
        %v785 = vpop.f32.mrf.mxu0
        %v786 = vadd.f32 0.0, %v785
        %v787 = vpop.f32.mrf.mxu0
        %788 = vdwg.mxu0
        %v789 = vpack.c.bf16 %v786, %v786
        %791 = vrot.lane.b32.xlu0 %v789, 16
        %v792 = vpop.permute.xlu0 %791
        %vm794 = vcmask 191616
        %795 = vst.msk [vmem:[#allocation4] sm:$0xf] %vm794, %v792
        %v796 = vld [vmem:[#allocation2] sm:$0xf]
        %v797 = vld [vmem:[#allocation3] sm:$0xf]
        %798 = vrot.lane.b32.xlu0 %v655, 104
        %v799 = vpop.permute.xlu0 %798
        %v801 = vunpack.c.l.b16 %v796
        %v802 = vpack.c.b16 %v801, %v801
        %803 = vrot.lane.b32.xlu0 %v802, 104
        %v804 = vpop.permute.xlu0 %803
        %v806 = vsel %vm596, %v799, 0
        %v809 = vsel %vm596, %v804, 0
        %811 = vmatpush.bf16.xpose.msra.mxu0 0
        %812 = vmatpush.bf16.xpose.msra.mxu0 0
        %813 = vmatpush.bf16.xpose.msra.mxu0 0
        %814 = vmatpush.bf16.xpose.msra.mxu0 0
        %815 = vmatpush.bf16.xpose.msra.mxu0 0
        %816 = vmatpush.bf16.xpose.msra.mxu0 0
        %817 = vmatpush.bf16.xpose.msra.mxu0 0
        %818 = vmatpush.bf16.xpose.msra.mxu0 %v809
        %819 = vmatmul.bf16.gmra.mxu0 %v806
        %v820 = vpop.f32.mrf.mxu0
        %v821 = vadd.f32 0.0, %v820
        %v822 = vpop.f32.mrf.mxu0
        %823 = vdwg.mxu0
        %v824 = vsel %vm596, %v821, -inf
        %825 = vmax.xlane.f32.xlu0 %v824
        %v826 = vpop.xlane.xlu0 %825
        %v827 = vsub.f32 %v821, %v826
        %v828 = vmul.f32 %v827, 1.442695
        %v829 = vpow.pop %v828
        %v830 = vsel %vm596, %v829, 0.0
        %831 = vadd.xlane.f32.xlu0 %v830
        %v832 = vpop.xlane.xlu0 %831
        %v833 = vrcp.pop %v832
        %v834 = vmul.f32 %v829, %v833
        %v835 = vpack.c.bf16 %v834, %v834
        %v837 = vunpack.c.l.b16 %v797
        %v838 = vpack.c.b16 %v837, %v837
        %839 = vrot.lane.b32.xlu0 %v838, 104
        %v840 = vpop.permute.xlu0 %839
        %v842 = vsel %vm596, %v835, 0
        %v845 = vsel %vm631, %v840, 0
        %847 = vmatpush.bf16.msra.mxu0 0
        %848 = vmatpush.bf16.msra.mxu0 0
        %849 = vmatpush.bf16.msra.mxu0 0
        %850 = vmatpush.bf16.msra.mxu0 0
        %851 = vmatpush.bf16.msra.mxu0 0
        %852 = vmatpush.bf16.msra.mxu0 0
        %853 = vmatpush.bf16.msra.mxu0 0
        %854 = vmatpush.bf16.msra.mxu0 %v845
        %855 = vmatmul.bf16.gmra.mxu0 %v842
        %v856 = vpop.f32.mrf.mxu0
        %v857 = vadd.f32 0.0, %v856
        %v858 = vpop.f32.mrf.mxu0
        %859 = vdwg.mxu0
        %v860 = vpack.c.bf16 %v857, %v857
        %862 = vrot.lane.b32.xlu0 %v860, 24
        %v863 = vpop.permute.xlu0 %862
        %vm865 = vcmask 257216
        %866 = vst.msk [vmem:[#allocation4] sm:$0xf] %vm865, %v863
        %v867 = vld [vmem:[#allocation4] sm:$0xf]
        %v868 = vld [vmem:[#allocation16] sm:$0xf]
        %v869 = vld [vmem:[#allocation16 + $0x4] sm:$0xf]
        %v870 = vld [vmem:[#allocation16 + $0x8] sm:$0xf]
        %v871 = vld [vmem:[#allocation16 + $0xc] sm:$0xf]
        %v872 = vld [vmem:[%s7] sm:$0x1]
        %v874 = vperm.slane %v872, 0
        %v880 = vunpack.c.l.b16 %v868
        %v881 = vunpack.c.l.b16 %v869
        %v882 = vunpack.c.l.b16 %v870
        %v883 = vunpack.c.l.b16 %v871
        %v884 = vpack.c.b16 %v881, %v880
        %v885 = vpack.c.b16 %v883, %v882
        %v889 = vsel %vm575, %v867, 0
        %891 = vmatpush.bf16.msra.mxu0 0
        %892 = vmatpush.bf16.msra.mxu0 0
        %893 = vmatpush.bf16.msra.mxu0 0
        %894 = vmatpush.bf16.msra.mxu0 0
        %895 = vmatpush.bf16.msra.mxu0 0
        %896 = vmatpush.bf16.msra.mxu0 0
        %897 = vmatpush.bf16.msra.mxu0 %v885
        %898 = vmatpush.bf16.msra.mxu0 %v884
        %899 = vmatmul.bf16.gmra.mxu0 %v889
        %v900 = vpop.f32.mrf.mxu0
        %v901 = vadd.f32 %v874, %v900
        %v902 = vpop.f32.mrf.mxu0
        %903 = vdwg.mxu0
        %v904 = vpack.c.bf16 %v901, %v901
        %vm905 = vcmask 257024
        %906 = vst.msk [vmem:[%s480] sm:$0xf] %vm905, %v904
        %s907 = sand.u32 %s237, 1
        %s908 = scalar_lea.sflag [#allocation7], %s907
        %s909 = sand.u32 %s237, 1
        %s910 = smul.addr %s909, 4
        %s911 = scalar_lea.vmem [#allocation17], %s910
        // Predicated region
        $region85: #{tpu_custom_call.1} parent=51 // pred_check
          %p912 = pneg %p247
        $region86: #{tpu_custom_call.1} parent=51 // pred_check_branch
          %914 = sbr.rel (%p912) target = $region88
        $region87: #{tpu_custom_call.1} parent=51 // pred_region
          %916 = vsyncadd %s908, 0
          %s917 = sadd.s32 %s35, %s34
          %s918 = smul.addr %s917, 4
          %s919 = scalar_lea.hbm %s8, %s918
          %s921 = sshll.u32 %s911, 4
          %s922 = int_to_ptr.vmem [resolvable:$true] %s921
          %s923 = sshll.u32 %s919, 4
          %s924 = int_to_ptr.hbm [resolvable:$true] %s923
          %926 = dma.vmem_to_hbm [thread:$0]  %s922, 64, %s924, %s908
        $region88: #{tpu_custom_call.1} parent=51 // pred_fallthru
          _
      $region52: #{tpu_custom_call.1} parent=5 // pred_fallthru
        _
      %p927 = scmp.le.s32.totalorder 2, %s25
      // Predicated region
      $region89: #{tpu_custom_call.1} parent=5 // pred_check
        %p928 = pneg %p927
      $region90: #{tpu_custom_call.1} parent=5 // pred_check_branch
        %930 = sbr.rel (%p928) target = $region92
      $region91: #{tpu_custom_call.1} parent=5 // pred_region
        %s931 = ssub.s32 %s25, 2
        // Predicated region
        $region93: #{tpu_custom_call.1} parent=91 // pred_check
          %p932 = pneg %p253
        $region94: #{tpu_custom_call.1} parent=91 // pred_check_branch
          %934 = sbr.rel (%p932) target = $region96
        $region95: #{tpu_custom_call.1} parent=91 // pred_region
          %s935 = sand.u32 %s238, 1
          %s936 = scalar_lea.sflag [#allocation7], %s935
          %s937 = sand.u32 %s238, 1
          %s938 = smul.addr %s937, 4
          %s939 = scalar_lea.vmem [#allocation17], %s938
          %941 = dma.done %s936, 64
        $region96: #{tpu_custom_call.1} parent=91 // pred_fallthru
          _
      $region92: #{tpu_custom_call.1} parent=5 // pred_fallthru
        _
    $region6: #{tpu_custom_call.1} parent=1 // loop_footer
      %s29 = sadd.s32 1, %s25
    $region7: #{tpu_custom_call.1} parent=1 // loop_footer_branch
      %24 = sbr.rel target = $region3
    $region8: #{tpu_custom_call.1} parent=1 // loop_exit
      _
    %942 = vsyncpa [#allocation6], 1
    %s943 = scalar_lea.sflag [#allocation6], 1
    %944 = vsyncpa %s943, 1
    %945 = vsyncpa [#allocation9], 1
    %s946 = scalar_lea.sflag [#allocation9], 1
    %947 = vsyncpa %s946, 1
    %948 = vsyncpa [#allocation12], 1
    %949 = vsyncpa [#allocation15], 1
    %950 = vsyncpa [#allocation7], 1
    %s951 = scalar_lea.sflag [#allocation7], 1
    %952 = vsyncpa %s951, 1

</llo_original>
